<compile_context>
chip_gen: v6e
topology: v6e:2x2x1
jax: 0.10.0
libtpu: 0.0.40
codegen_flags: <defaults>
</compile_context>

<pallas_src>
import jax
import jax.numpy as jnp
from jax import lax
from jax.experimental import pallas as pl
from jax.experimental.pallas import tpu as pltpu


_SUBLANE = 8           # f32 sublane tile height
_LANES = 128           # lane width
_MAX_TILE_TOKENS = 512 # tokens (output rows) per grid step
_ONEHOT_MAX_VOCAB = 4096  # above this the (TM, V) one-hot gets too wide


def _round_up(x, m):
    return (x + m - 1) // m * m


def _vmem_capacity_bytes():
    """Physical VMEM per core for the current generation (fallback: v7x 64 MiB)."""
    try:
        return int(pltpu.get_tpu_info().vmem_capacity_bytes)
    except Exception:  # interpret mode / older runtimes
        return 64 * 1024 * 1024


# --------------------------------------------------------------------------
# Path 1: VMEM-resident table, one-hot MXU gather.
# --------------------------------------------------------------------------
def _embed_onehot_kernel(ids_ref, emb_ref, out_ref):
    """ids_ref: VMEM (TM, 1) int32; emb_ref: VMEM (V, D) resident; out_ref: (TM, D)."""
    tm = ids_ref.shape[0]
    v = emb_ref.shape[0]
    ids = ids_ref[...]                                        # (TM, 1)
    iota = lax.broadcasted_iota(jnp.int32, (tm, v), 1)        # (TM, V)
    # Out-of-range / padded ids produce an all-zero one-hot row (zero output).
    onehot = (ids == iota).astype(emb_ref.dtype)              # (TM, V)
    out_ref[...] = jnp.dot(
        onehot, emb_ref[...], preferred_element_type=jnp.float32
    ).astype(out_ref.dtype)


# --------------------------------------------------------------------------
# Path 2: table stays in HBM, double-buffered per-row DMA gather.
# --------------------------------------------------------------------------
def _embed_hbm_gather_kernel(ids_ref, emb_hbm, out_ref, row_buf, sem):
    """ids_ref: SMEM (N_pad,) int32 (scalar prefetch); emb_hbm: HBM (V, D);
    out_ref: VMEM (TM, D); row_buf: VMEM (2, 1, D); sem: DMA sems (2,)."""
    t = pl.program_id(0)
    tm = out_ref.shape[0]
    v = emb_hbm.shape[0]
    base = t * tm

    def start_fetch(i, slot):
        # Clamp: DMA OOB is runtime-checked and would fault.
        tok = jnp.clip(ids_ref[base + i], 0, v - 1)
        pltpu.make_async_copy(
            emb_hbm.at[pl.ds(tok, 1), :], row_buf.at[slot], sem.at[slot]
        ).start()

    start_fetch(0, 0)

    def body(i, carry):
        slot = lax.rem(i, 2)
        pltpu.make_async_copy(
            emb_hbm.at[pl.ds(0, 1), :], row_buf.at[slot], sem.at[slot]
        ).wait()

        @pl.when(i + 1 < tm)
        def _():
            start_fetch(i + 1, 1 - slot)

        out_ref[pl.ds(i, 1), :] = row_buf[slot]
        return carry

    lax.fori_loop(0, tm, body, 0)


# --------------------------------------------------------------------------
# Wrapper
# --------------------------------------------------------------------------
def embedding_lookup(token_ids, emb_table, *, force_hbm_gather=False):
    """Embedding gather: token_ids [...,] int, emb_table [V, D] -> [..., D]."""
    orig_shape = token_ids.shape
    V, D = emb_table.shape
    itemsize = jnp.dtype(emb_table.dtype).itemsize

    ids_flat = token_ids.reshape(-1).astype(jnp.int32)
    N = ids_flat.shape[0]

    # Token tile: large to amortize per-grid-step overhead, multiple of 8 so
    # every output store is a dense sublane-aligned (TM, D) slab.
    TM = _MAX_TILE_TOKENS if N >= _MAX_TILE_TOKENS else _round_up(max(N, 1), _SUBLANE)
    N_pad = _round_up(N, TM)
    if N_pad != N:
        ids_flat = jnp.pad(ids_flat, (0, N_pad - N))  # pad with id 0 (sliced off)
    num_tiles = N_pad // TM

    table_bytes = V * D * itemsize
    out_block_bytes = TM * D * itemsize
    capacity = _vmem_capacity_bytes()

    use_resident = (
        not force_hbm_gather
        and table_bytes <= capacity // 2
        and V <= _ONEHOT_MAX_VOCAB
    )

    if use_resident:
        ids_col = ids_flat.reshape(N_pad, 1)
        # Honest VMEM accounting: 1x table (untiled => NOT double-buffered),
        # 2x output block, 2x ids block (lane-padded), ~2x one-hot intermediate.
        ids_block_bytes = TM * _LANES * 4
        onehot_bytes = TM * max(V, _LANES) * 4
        vmem_needed = (table_bytes + 2 * out_block_bytes
                       + 2 * ids_block_bytes + 2 * onehot_bytes)
        vmem_limit = int(1.4 * vmem_needed) + (1 << 20)
        vmem_limit = max(vmem_limit, 32 * 1024 * 1024)
        vmem_limit = min(vmem_limit, capacity)

        out_flat = pl.pallas_call(
            _embed_onehot_kernel,
            out_shape=jax.ShapeDtypeStruct((N_pad, D), emb_table.dtype),
            grid=(num_tiles,),
            in_specs=[
                pl.BlockSpec((TM, 1), lambda t: (t, 0)),
                # Whole table, untiled, VMEM-resident, single-buffered.
                pl.BlockSpec(memory_space=pltpu.MemorySpace.VMEM),
            ],
            out_specs=pl.BlockSpec((TM, D), lambda t: (t, 0)),
            compiler_params=pltpu.CompilerParams(
                dimension_semantics=("parallel",),  # token tiles are independent
                vmem_limit_bytes=vmem_limit,
            ),
        )(ids_col, emb_table)
    else:
        grid_spec = pltpu.PrefetchScalarGridSpec(
            num_scalar_prefetch=1,                       # flattened 1-D ids -> SMEM
            grid=(num_tiles,),
            in_specs=[pl.BlockSpec(memory_space=pl.ANY)],  # table stays in HBM
            out_specs=pl.BlockSpec((TM, D), lambda t, ids: (t, 0)),
            scratch_shapes=[
                pltpu.VMEM((2, 1, D), emb_table.dtype),     # double-buffered row
                pltpu.SemaphoreType.DMA((2,)),
            ],
        )
        out_flat = pl.pallas_call(
            _embed_hbm_gather_kernel,
            out_shape=jax.ShapeDtypeStruct((N_pad, D), emb_table.dtype),
            grid_spec=grid_spec,
            compiler_params=pltpu.CompilerParams(
                dimension_semantics=("arbitrary",),
            ),
        )(ids_flat, emb_table)

    return out_flat[:N].reshape(*orig_shape, D)


class ClassifierPallas:
    """JAX/Pallas port of the reference `Classifier` module."""

    def __init__(self, args, key):
        self.args = args
        self.embedding_dim = args["embedding_dim"]
        # padding_idx only zeroes the pad row's gradient in torch; the forward
        # lookup is identical, so it is kept only for parity.
        self.pad_token_id = args["pad_token_id"]
        # nn.Embedding default init is N(0, 1).
        self.embedding_weight = jax.random.normal(
            key, (args["vocab_size"], args["embedding_dim"]), dtype=jnp.float32
        )

    def embed(self, token_ids, **kwargs):
        return embedding_lookup(token_ids, self.embedding_weight, **kwargs)

    def forward(self, batch):
        # Reference forward() is a stub returning None; kept for parity.
        return None


if __name__ == "__main__":
    args = {
        "vocab_size": 64,
        "embedding_dim": 128,   # lane-aligned
        "pad_token_id": 0,
    }

    key = jax.random.PRNGKey(0)
    k_emb, k_ids = jax.random.split(key)

    model = ClassifierPallas(args, k_emb)

    B, S = 2, 8
    token_ids = jax.random.randint(
        k_ids, (B, S), minval=0, maxval=args["vocab_size"], dtype=jnp.int32
    )

    # Reference: plain-JAX gather (== torch nn.Embedding lookup).
    ref = jnp.take(model.embedding_weight, token_ids, axis=0)

    # Main path: VMEM-resident table + one-hot MXU gather.
    out = jax.block_until_ready(model.embed(token_ids))
    assert out.shape == (B, S, args["embedding_dim"])
    assert jnp.allclose(out, ref), "one-hot MXU gather mismatch"

    # Fallback path: HBM-resident table + double-buffered DMA row gather.
    out_hbm = jax.block_until_ready(model.embed(token_ids, force_hbm_gather=True))
    assert jnp.allclose(out_hbm, ref), "HBM DMA-gather fallback mismatch"

    # forward() itself is a no-op in the reference module.
    assert model.forward(token_ids) is None

    print("KERNEL_OK")
</pallas_src>

<mosaic_0001>
module attributes {stable_mosaic.version = 11 : i64} {
  func.func @_embed_onehot_kernel(%arg0: i32, %arg1: memref<16x1xi32, #tpu.memory_space<vmem>>, %arg2: memref<64x128xf32, #tpu.memory_space<vmem>>, %arg3: memref<16x128xf32, #tpu.memory_space<vmem>>) attributes {dimension_semantics = [#tpu.dimension_semantics<parallel>], iteration_bounds = array<i64: 1>, scalar_prefetch = 0 : i64, scratch_operands = 0 : i64, tpu.core_type = #tpu.core_type<tc>, window_params = [{transform_indices = @transform_0, window_bounds = array<i64: 16, 1>}, {pipeline_mode = #tpu.pipeline_mode<synchronous>, transform_indices = @transform_1, window_bounds = array<i64: 64, 128>}, {transform_indices = @transform_2, window_bounds = array<i64: 16, 128>}]} {
    %c0 = arith.constant 0 : index
    %c0_0 = arith.constant 0 : index
    %0 = vector.load %arg1[%c0, %c0_0] : memref<16x1xi32, #tpu.memory_space<vmem>>, vector<16x1xi32>
    %1 = tpu.iota {dimensions = array<i32: 1>} : vector<16x64xi32>
    %2 = vector.broadcast %0 : vector<16x1xi32> to vector<16x64xi32>
    %3 = arith.cmpi eq, %2, %1 : vector<16x64xi32>
    %4 = arith.extui %3 : vector<16x64xi1> to vector<16x64xi32>
    %5 = arith.sitofp %4 : vector<16x64xi32> to vector<16x64xf32>
    %c0_1 = arith.constant 0 : index
    %c0_2 = arith.constant 0 : index
    %6 = vector.load %arg2[%c0_1, %c0_2] : memref<64x128xf32, #tpu.memory_space<vmem>>, vector<64x128xf32>
    %cst = arith.constant dense<0.000000e+00> : vector<16x128xf32>
    %7 = tpu.matmul %5, %6, %cst {dimension_numbers = #tpu.dot_dimension_numbers<[1], [0], [0], [1], [0, 0, 1, 1], [], []>} : vector<16x64xf32>, vector<64x128xf32>, vector<16x128xf32> -> vector<16x128xf32>
    %c0_3 = arith.constant 0 : index
    %c0_4 = arith.constant 0 : index
    %8 = vector.load %arg3[%c0_3, %c0_4] : memref<16x128xf32, #tpu.memory_space<vmem>>, vector<16x128xf32>
    tpu.vector_store %arg3[%c0_3, %c0_4], %7 {strides = array<i32>} : memref<16x128xf32, #tpu.memory_space<vmem>>, vector<16x128xf32>,
    return
  }
  func.func @transform_0(%arg0: i32) -> (i32, i32) {
    %c0_i32 = arith.constant 0 : i32
    %c0_i32_0 = arith.constant 0 : i32
    return %arg0, %c0_i32 : i32, i32
  }
  func.func @transform_1(%arg0: i32) -> (i32, i32) {
    %c0_i32 = arith.constant 0 : i32
    %c0_i32_0 = arith.constant 0 : i32
    %c0_i32_1 = arith.constant 0 : i32
    return %c0_i32, %c0_i32_0 : i32, i32
  }
  func.func @transform_2(%arg0: i32) -> (i32, i32) {
    %c0_i32 = arith.constant 0 : i32
    %c0_i32_0 = arith.constant 0 : i32
    return %arg0, %c0_i32 : i32, i32
  }
}

</mosaic_0001>

<llo_original>
// kernel: tpu_custom_call.1
$region0: #{tpu_custom_call.1}
  #allocation0 [shape = 'u32[]', space=smem, size = 0x4, offset = 0x4, fixed_abs, tag = 'smem constant byte address 0x4 - core index']
  #allocation1 [shape = 'u32[144,128]{1,0:T(1,128)}', space=vmem, size = 0x12000, scoped, tag = 'internal scratch']
  %s0 = inlined_call_operand.vmem [shape: s32[16,1], index: 0, kind: input, shape index: {}]
  %s1 = inlined_call_operand.hbm [shape: f32[64,128], index: 1, kind: input, shape index: {}]
  %s2 = inlined_call_operand.hbm [shape: f32[16,128], index: 2, kind: output, shape index: {}]
  %s3 = sld [smem:[#allocation0]]
  $region22: #{tpu_custom_call.1} parent=0
    _
  %s5 = ssub.s32 1, %s3
  %s6 = scalar_select 0, %s5, %s3
  $region1: #{tpu_custom_call.1} parent=0
    #allocation2 [shape = 'u8[32768]{0}', space=vmem, size = 0x8000, scoped, tag = 'input window, operand 1, single buffered']
    #allocation3 [shape = 's32[1]{0}', space=sflag, size = 0x4, scoped, tag = 'scoped memory for tpu_custom_call.1']
    #allocation4 [shape = 's32[1]{0}', space=sflag, size = 0x4, scoped, tag = 'scoped memory for tpu_custom_call.1']
    #allocation5 [shape = 'u8[8192]{0}', space=vmem, size = 0x2000, scoped, tag = 'output window, operand 0, single buffered']
    %7 = vsyncpa [#allocation3], 0
    %8 = vsyncpa [#allocation4], 0
    // Predicated region
    $region2: #{tpu_custom_call.1} parent=1 // pred_check
      _
    $region3: #{tpu_custom_call.1} parent=1 // pred_check_branch
      %10 = sbr.rel (0) target = $region5
    $region4: #{tpu_custom_call.1} parent=1 // pred_region
      _
    $region5: #{tpu_custom_call.1} parent=1 // pred_fallthru
      _
    // Predicated region
    $region6: #{tpu_custom_call.1} parent=1 // pred_check
      _
    $region7: #{tpu_custom_call.1} parent=1 // pred_check_branch
      %12 = sbr.rel (0) target = $region9
    $region8: #{tpu_custom_call.1} parent=1 // pred_region
      %s14 = ssub.s32 1024, 1024
      %15 = vsyncadd [#allocation3], %s14
      %s16 = sshll.u32 [#allocation2], 4
      %s17 = int_to_ptr.vmem [resolvable:$true] %s16
      %22 = dma.hbm_to_vmem [thread:$0]  %s1, 1024, %s17, [#allocation3], 128, 128, 8
    $region9: #{tpu_custom_call.1} parent=1 // pred_fallthru
      _
    // Predicated region
    $region10: #{tpu_custom_call.1} parent=1 // pred_check
      _
    $region11: #{tpu_custom_call.1} parent=1 // pred_check_branch
      %24 = sbr.rel (0) target = $region13
    $region12: #{tpu_custom_call.1} parent=1 // pred_region
      %25 = dma.done [#allocation3], 1024
    $region13: #{tpu_custom_call.1} parent=1 // pred_fallthru
      _
    %v26 = vld [vmem:[%s0] sm:$0xff]
    %v27 = vld [vmem:[%s0 + $0x8] sm:$0xff]
    %v28 = vlaneseq
    %v29 = vand.u32 %v28, 127
    %30 = vset.pattern.permute.xlu0 0
    %31 = vperm.xlu0 %30, %v26
    %v32 = vpop.permute.xlu0 %31
    %33 = vset.pattern.permute.xlu0 0
    %34 = vperm.xlu0 %33, %v27
    %v35 = vpop.permute.xlu0 %34
    %vm36 = vcmp.eq.s32.totalorder %v32, %v29
    %vm37 = vcmp.eq.s32.totalorder %v35, %v29
    %v38 = vsel %vm36, 1, 0
    %v39 = vsel %vm37, 1, 0
    %v40 = vcvt.s32.f32 %v38
    %v41 = vcvt.s32.f32 %v39
    %v42 = vld [vmem:[#allocation2] sm:$0xff]
    %v43 = vld [vmem:[#allocation2 + $0x8] sm:$0xff]
    %v44 = vld [vmem:[#allocation2 + $0x10] sm:$0xff]
    %v45 = vld [vmem:[#allocation2 + $0x18] sm:$0xff]
    %v46 = vld [vmem:[#allocation2 + $0x20] sm:$0xff]
    %v47 = vld [vmem:[#allocation2 + $0x28] sm:$0xff]
    %v48 = vld [vmem:[#allocation2 + $0x30] sm:$0xff]
    %v49 = vld [vmem:[#allocation2 + $0x38] sm:$0xff]
    %vm50 = vcmask 523264
    %v52 = vsel %vm50, %v40, 0
    %v55 = vsel %vm50, %v41, 0
    %57 = vmatprep.subr.mxu0 0.0
    %58 = vmatpush1.msra.mxu0 0.0
    %59 = vmatprep.subr.mxu0 0.0
    %60 = vmatpush1.msra.mxu0 0.0
    %61 = vmatprep.subr.mxu0 0.0
    %62 = vmatpush1.msra.mxu0 0.0
    %63 = vmatprep.subr.mxu0 0.0
    %64 = vmatpush1.msra.mxu0 0.0
    %65 = vmatprep.subr.mxu0 0.0
    %66 = vmatpush1.msra.mxu0 0.0
    %67 = vmatprep.subr.mxu0 0.0
    %68 = vmatpush1.msra.mxu0 0.0
    %69 = vmatprep.subr.mxu0 0.0
    %70 = vmatpush1.msra.mxu0 0.0
    %71 = vmatprep.subr.mxu0 0.0
    %72 = vmatpush1.msra.mxu0 0.0
    %73 = vmatprep.subr.mxu0 0.0
    %74 = vmatpush1.msra.mxu0 %v49
    %75 = vmatprep.subr.mxu0 0.0
    %76 = vmatpush1.msra.mxu0 %v48
    %77 = vmatprep.subr.mxu0 0.0
    %78 = vmatpush1.msra.mxu0 %v47
    %79 = vmatprep.subr.mxu0 0.0
    %80 = vmatpush1.msra.mxu0 %v46
    %81 = vmatprep.subr.mxu0 0.0
    %82 = vmatpush1.msra.mxu0 %v45
    %83 = vmatprep.subr.mxu0 0.0
    %84 = vmatpush1.msra.mxu0 %v44
    %85 = vmatprep.subr.mxu0 0.0
    %86 = vmatpush1.msra.mxu0 %v43
    %87 = vmatprep.subr.mxu0 0.0
    %88 = vmatpush1.msra.mxu0 %v42
    %89 = vmatprep.subr.mxu0 0.0
    %90 = vmatpush2.msra.mxu0 0.0
    %91 = vmatprep.subr.mxu0 0.0
    %92 = vmatpush2.msra.mxu0 0.0
    %93 = vmatprep.subr.mxu0 0.0
    %94 = vmatpush2.msra.mxu0 0.0
    %95 = vmatprep.subr.mxu0 0.0
    %96 = vmatpush2.msra.mxu0 0.0
    %97 = vmatprep.subr.mxu0 0.0
    %98 = vmatpush2.msra.mxu0 0.0
    %99 = vmatprep.subr.mxu0 0.0
    %100 = vmatpush2.msra.mxu0 0.0
    %101 = vmatprep.subr.mxu0 0.0
    %102 = vmatpush2.msra.mxu0 0.0
    %103 = vmatprep.subr.mxu0 0.0
    %104 = vmatpush2.msra.mxu0 0.0
    %105 = vmatprep.subr.mxu0 0.0
    %106 = vmatpush2.msra.mxu0 0.0
    %107 = vmatprep.subr.mxu0 0.0
    %108 = vmatpush2.msra.mxu0 0.0
    %109 = vmatprep.subr.mxu0 0.0
    %110 = vmatpush2.msra.mxu0 0.0
    %111 = vmatprep.subr.mxu0 0.0
    %112 = vmatpush2.msra.mxu0 0.0
    %113 = vmatprep.subr.mxu0 0.0
    %114 = vmatpush2.msra.mxu0 0.0
    %115 = vmatprep.subr.mxu0 0.0
    %116 = vmatpush2.msra.mxu0 0.0
    %117 = vmatprep.subr.mxu0 0.0
    %118 = vmatpush2.msra.mxu0 0.0
    %119 = vmatprep.subr.mxu0 0.0
    %120 = vmatpush2.msra.mxu0 0.0
    %121 = vmatprep.mubr.f32.mxu0 0.0
    %122 = vmatmul.mubr.f32.gmra.mxu0 %v52
    %v123 = vpop.f32.mrf.mxu0
    %v124 = vadd.f32 0.0, %v123
    %v125 = vpop.f32.mrf.mxu0
    %126 = vmatprep.mubr.f32.mxu0 0.0
    %127 = vmatmul.mubr.f32.gmra.mxu0 %v55
    %v128 = vpop.f32.mrf.mxu0
    %v129 = vadd.f32 0.0, %v128
    %v130 = vpop.f32.mrf.mxu0
    %131 = vdwg.mxu0
    %132 = vst [vmem:[#allocation5] sm:$0xff] %v124
    %133 = vst [vmem:[#allocation5 + $0x8] sm:$0xff] %v129
    // Predicated region
    $region14: #{tpu_custom_call.1} parent=1 // pred_check
      _
    $region15: #{tpu_custom_call.1} parent=1 // pred_check_branch
      %135 = sbr.rel (0) target = $region17
    $region16: #{tpu_custom_call.1} parent=1 // pred_region
      %s137 = ssub.s32 256, 256
      %138 = vsyncadd [#allocation4], %s137
      %s139 = sshll.u32 [#allocation5], 4
      %s140 = int_to_ptr.vmem [resolvable:$true] %s139
      %145 = dma.vmem_to_hbm [thread:$0]  %s140, 256, %s2, [#allocation4], 128, 128, 8
    $region17: #{tpu_custom_call.1} parent=1 // pred_fallthru
      _
    // Predicated region
    $region18: #{tpu_custom_call.1} parent=1 // pred_check
      _
    $region19: #{tpu_custom_call.1} parent=1 // pred_check_branch
      %147 = sbr.rel (0) target = $region21
    $region20: #{tpu_custom_call.1} parent=1 // pred_region
      %148 = dma.done [#allocation4], 256
    $region21: #{tpu_custom_call.1} parent=1 // pred_fallthru
      _
    %149 = vsyncpa [#allocation3], 1
    %150 = vsyncpa [#allocation4], 1

</llo_original>
